<compile_context>
chip_gen: v7x
topology: tpu7x:2x2x1
jax: 0.10.0
libtpu: 0.0.40
codegen_flags: <defaults>
</compile_context>

<pallas_src>
import functools

import jax
import jax.numpy as jnp
from jax.experimental import pallas as pl
from jax.experimental.pallas import tpu as pltpu


def _copy_kernel(x_ref, o_ref):
    # Pure pass-through: load the current VMEM tile and store it unchanged.
    o_ref[...] = x_ref[...]


_LANE_W = 512                       # wide lane dim (multiple of 128)
_TARGET_BLOCK_BYTES = 2 * 1024 * 1024   # ~2 MiB blocks: safe on all generations


@functools.partial(jax.jit)
def model_forward(x: jax.Array) -> jax.Array:
    """Identity forward (abstract Model.forward defines no computation)."""
    orig_shape = x.shape
    orig_dtype = x.dtype
    n = x.size

    itemsize = jnp.dtype(orig_dtype).itemsize

    # Lane-dense 2-D view: last dim = _LANE_W lanes, rows on sublanes.
    rows_needed = -(-n // _LANE_W)                                  # ceil div
    # Block row count: target ~2 MiB per block, multiple of 8 sublanes.
    tile_r = max(8, _TARGET_BLOCK_BYTES // (_LANE_W * itemsize))
    tile_r = (tile_r // 8) * 8
    tile_r = min(tile_r, -(-rows_needed // 8) * 8)                  # small inputs
    padded_rows = -(-rows_needed // tile_r) * tile_r
    padded_n = padded_rows * _LANE_W

    flat = x.reshape(-1)
    if padded_n != n:
        flat = jnp.pad(flat, (0, padded_n - n))
    x2d = flat.reshape(padded_rows, _LANE_W)

    grid = (padded_rows // tile_r,)
    out2d = pl.pallas_call(
        _copy_kernel,
        out_shape=jax.ShapeDtypeStruct((padded_rows, _LANE_W), orig_dtype),
        grid=grid,
        in_specs=[pl.BlockSpec((tile_r, _LANE_W), lambda i: (i, 0))],
        out_specs=pl.BlockSpec((tile_r, _LANE_W), lambda i: (i, 0)),
        # Donate the (padded) input buffer: no extra HBM output allocation.
        input_output_aliases={0: 0},
        compiler_params=pltpu.CompilerParams(
            # Blocks are independent -> shard across v7x's two TensorCores.
            dimension_semantics=("parallel",),
        ),
    )(x2d)

    return out2d.reshape(-1)[:n].reshape(orig_shape)


if __name__ == "__main__":
    key = jax.random.PRNGKey(0)
    # Small NCHW input consistent with a typical concrete subclass: [2, 4, 16, 16]
    x = jax.random.normal(key, (2, 4, 16, 16), dtype=jnp.float32)

    y = model_forward(x)
    jax.block_until_ready(y)

    # Identity semantics check.
    assert y.shape == x.shape and y.dtype == x.dtype
    assert bool(jnp.allclose(y, x))

    print("KERNEL_OK")
</pallas_src>

<mosaic_0001>
module attributes {stable_mosaic.version = 11 : i64} {
  func.func @_copy_kernel(%arg0: i32, %arg1: memref<8x512xf32, #tpu.memory_space<vmem>>, %arg2: memref<8x512xf32, #tpu.memory_space<vmem>>) attributes {dimension_semantics = [#tpu.dimension_semantics<parallel>], iteration_bounds = array<i64: 1>, scalar_prefetch = 0 : i64, scratch_operands = 0 : i64, tpu.core_type = #tpu.core_type<tc>, window_params = [{transform_indices = @transform_0, window_bounds = array<i64: 8, 512>}, {transform_indices = @transform_1, window_bounds = array<i64: 8, 512>}]} {
    %c0 = arith.constant 0 : index
    %c0_0 = arith.constant 0 : index
    %0 = vector.load %arg1[%c0, %c0_0] : memref<8x512xf32, #tpu.memory_space<vmem>>, vector<8x512xf32>
    %c0_1 = arith.constant 0 : index
    %c0_2 = arith.constant 0 : index
    %1 = vector.load %arg2[%c0_1, %c0_2] : memref<8x512xf32, #tpu.memory_space<vmem>>, vector<8x512xf32>
    tpu.vector_store %arg2[%c0_1, %c0_2], %0 {strides = array<i32>} : memref<8x512xf32, #tpu.memory_space<vmem>>, vector<8x512xf32>,
    return
  }
  func.func @transform_0(%arg0: i32) -> (i32, i32) {
    %c0_i32 = arith.constant 0 : i32
    %c0_i32_0 = arith.constant 0 : i32
    return %arg0, %c0_i32 : i32, i32
  }
  func.func @transform_1(%arg0: i32) -> (i32, i32) {
    %c0_i32 = arith.constant 0 : i32
    %c0_i32_0 = arith.constant 0 : i32
    return %arg0, %c0_i32 : i32, i32
  }
}

</mosaic_0001>

<llo_original>
// kernel: model_forward.1
$region0: #{model_forward.1}
  #allocation0 [shape = 'u32[]', space=smem, size = 0x4, offset = 0x4, fixed_abs, tag = 'smem constant byte address 0x4 - core index']
  #allocation1 [shape = 'u32[144,128]{1,0:T(1,128)}', space=vmem, size = 0x12000, scoped, tag = 'internal scratch']
  %s0 = inlined_call_operand.vmem [shape: f32[8,512], index: 0, kind: input, shape index: {}, may-alias: {0,1}]
  %s1 = inlined_call_operand.vmem [shape: f32[8,512], index: 1, kind: output, shape index: {}, may-alias: {0,1}]
  %s2 = sld [smem:[#allocation0]]
  $region14: #{model_forward.1} parent=0
    _
  %s4 = ssub.s32 1, %s2
  %s5 = scalar_select 0, %s4, %s2
  // Predicated region
  $region2: #{model_forward.1} parent=0 // pred_check
    _
  $region3: #{model_forward.1} parent=0 // pred_check_branch
    %7 = sbr.rel (0) target = $region5
  $region4: #{model_forward.1} parent=0 // pred_region
    _
  $region5: #{model_forward.1} parent=0 // pred_fallthru
    _
  %v8 = vld [vmem:[%s0] sm:$0xff]
  %v9 = vld [vmem:[%s0 + $0x8] sm:$0xff]
  %v10 = vld [vmem:[%s0 + $0x10] sm:$0xff]
  %v11 = vld [vmem:[%s0 + $0x18] sm:$0xff]
  %12 = vst [vmem:[%s1] sm:$0xff] %v8
  %13 = vst [vmem:[%s1 + $0x8] sm:$0xff] %v9
  %14 = vst [vmem:[%s1 + $0x10] sm:$0xff] %v10
  %15 = vst [vmem:[%s1 + $0x18] sm:$0xff] %v11
  // Predicated region
  $region6: #{model_forward.1} parent=0 // pred_check
    _
  $region7: #{model_forward.1} parent=0 // pred_check_branch
    %17 = sbr.rel (0) target = $region9
  $region8: #{model_forward.1} parent=0 // pred_region
    _
  $region9: #{model_forward.1} parent=0 // pred_fallthru
    _
  // Predicated region
  $region10: #{model_forward.1} parent=0 // pred_check
    _
  $region11: #{model_forward.1} parent=0 // pred_check_branch
    %19 = sbr.rel (0) target = $region13
  $region12: #{model_forward.1} parent=0 // pred_region
    _
  $region13: #{model_forward.1} parent=0 // pred_fallthru
    _

</llo_original>
